<compile_context>
chip_gen: v7x
topology: tpu7x:2x2x1
jax: 0.10.0
libtpu: 0.0.40
codegen_flags: <defaults>
</compile_context>

<pallas_src>
import functools

import jax
import jax.numpy as jnp
from jax.experimental import pallas as pl
from jax.experimental.pallas import tpu as pltpu

EMBED_SIZE = 128       # args.embed_size
PROMPT_DROPOUT = 0.3   # args.prompt_dropout
N_ITEMS = 32
N_USERS = 64


def _round_up(n, m):
    return ((n + m - 1) // m) * m


def _prompt_kernel(x_ref, wt_ref, b_ref, u_ref, o_ref, *, p):
    """One weight set: y = dropout(x @ W^T + b, p).

    x_ref : (M_pad, D)  rows for this set (user or item, zero padded)
    wt_ref: (D, D)      weight already transposed to (in, out) -> plain matmul
    b_ref : (1, D)      bias, broadcasts over rows
    u_ref : (M_pad, D)  uniform[0,1) randoms for the dropout mask
    """
    y = jnp.dot(x_ref[...], wt_ref[...], preferred_element_type=jnp.float32)
    y = y + b_ref[...]
    if p > 0.0:  # static (eval / p=0 path compiles to a pure linear)
        scale = 1.0 / (1.0 - p)
        y = jnp.where(u_ref[...] >= p, y * scale, 0.0)
    o_ref[...] = y.astype(o_ref.dtype)


@functools.partial(jax.jit, static_argnames=("p", "training"))
def prompt_forward(user_x, item_x, w_user, b_user, w_item, b_item, key,
                   *, p=PROMPT_DROPOUT, training=True):
    """Fused forward: returns (user_prompt, item_prompt)."""
    n_users, D = user_x.shape
    n_items, D2 = item_x.shape
    assert D == D2 and w_user.shape == (D, D) and w_item.shape == (D, D)

    m_pad = _round_up(max(n_users, n_items), 8)   # sublane alignment

    def pad_rows(x):
        return jnp.pad(x.astype(jnp.float32), ((0, m_pad - x.shape[0]), (0, 0)))

    x = jnp.stack([pad_rows(user_x), pad_rows(item_x)])            # (2, M_pad, D)
    wt = jnp.stack([w_user.T, w_item.T]).astype(jnp.float32)       # (2, D, D) = W^T
    b = jnp.stack([b_user, b_item]).reshape(2, 1, D).astype(jnp.float32)

    p_eff = float(p) if training else 0.0
    if p_eff > 0.0:
        # Disjoint dropout streams for user/item come from the stacked shape.
        u = jax.random.uniform(key, (2, m_pad, D), jnp.float32)
    else:
        u = jnp.ones((2, m_pad, D), jnp.float32)

    out = pl.pallas_call(
        functools.partial(_prompt_kernel, p=p_eff),
        out_shape=jax.ShapeDtypeStruct((2, m_pad, D), jnp.float32),
        grid=(2,),
        in_specs=[
            pl.BlockSpec((None, m_pad, D), lambda s: (s, 0, 0)),   # x
            pl.BlockSpec((None, D, D), lambda s: (s, 0, 0)),       # W^T
            pl.BlockSpec((None, 1, D), lambda s: (s, 0, 0)),       # b
            pl.BlockSpec((None, m_pad, D), lambda s: (s, 0, 0)),   # uniforms
        ],
        out_specs=pl.BlockSpec((None, m_pad, D), lambda s: (s, 0, 0)),
        compiler_params=pltpu.CompilerParams(
            dimension_semantics=("parallel",)),   # 2 independent sets -> 2 TCs on v7x
    )(x, wt, b, u)

    return out[0, :n_users], out[1, :n_items]


class PromptLearnerPallas:
    """JAX/Pallas re-implementation of PromptLearner (synthetic hard tokens)."""

    def __init__(self, image_feats, text_feats, ui_graph, key):
        # __init__ glue (plain JAX): hard tokens + user aggregation.
        # TODO(synk): PCA/ICA/Isomap fitting + pickle caching have no Pallas
        # equivalent (sklearn, init-time only); synthetic tokens are already
        # at embed_size.
        item_hard_token = jnp.mean(
            jnp.stack((image_feats.astype(jnp.float32),
                       text_feats.astype(jnp.float32))), axis=0)          # [n_items, D]
        user_hard_token = ui_graph.astype(jnp.float32) @ item_hard_token  # [n_users, D]
        self.item_hard_token = item_hard_token
        self.user_hard_token = user_hard_token

        D = item_hard_token.shape[1]
        k1, k2, k3, k4 = jax.random.split(key, 4)
        bound = 1.0 / (D ** 0.5)  # nn.Linear default init range
        self.w_user = jax.random.uniform(k1, (D, D), jnp.float32, -bound, bound)
        self.b_user = jax.random.uniform(k2, (D,), jnp.float32, -bound, bound)
        self.w_item = jax.random.uniform(k3, (D, D), jnp.float32, -bound, bound)
        self.b_item = jax.random.uniform(k4, (D,), jnp.float32, -bound, bound)

    def forward(self, key, training=True):
        # F.dropout in the reference defaults to training=True; flag provided
        # for an eval path.
        return prompt_forward(self.user_hard_token, self.item_hard_token,
                              self.w_user, self.b_user,
                              self.w_item, self.b_item,
                              key, p=PROMPT_DROPOUT, training=training)


if __name__ == "__main__":
    key = jax.random.PRNGKey(0)
    k_img, k_txt, k_graph, k_params, k_drop = jax.random.split(key, 5)

    # Synthetic "hard tokens" already at embed_size (stand-in for PCA output).
    image_feats = jax.random.normal(k_img, (N_ITEMS, EMBED_SIZE), jnp.float32)
    text_feats = jax.random.normal(k_txt, (N_ITEMS, EMBED_SIZE), jnp.float32)
    # Synthetic (dense) user-item interaction graph.
    ui_graph = (jax.random.uniform(k_graph, (N_USERS, N_ITEMS)) < 0.2
                ).astype(jnp.float32)

    model = PromptLearnerPallas(image_feats, text_feats, ui_graph, k_params)
    user_prompt, item_prompt = model.forward(k_drop)
    jax.block_until_ready((user_prompt, item_prompt))

    assert user_prompt.shape == (N_USERS, EMBED_SIZE)
    assert item_prompt.shape == (N_ITEMS, EMBED_SIZE)
    assert user_prompt.dtype == jnp.float32 and item_prompt.dtype == jnp.float32

    # ---- reference check (exact same dropout mask as the kernel uses) ----
    D = EMBED_SIZE
    m_pad = _round_up(max(N_USERS, N_ITEMS), 8)
    u = jax.random.uniform(k_drop, (2, m_pad, D), jnp.float32)
    scale = 1.0 / (1.0 - PROMPT_DROPOUT)
    ref_u_lin = model.user_hard_token @ model.w_user.T + model.b_user
    ref_i_lin = model.item_hard_token @ model.w_item.T + model.b_item
    ref_user = jnp.where(u[0, :N_USERS] >= PROMPT_DROPOUT, ref_u_lin * scale, 0.0)
    ref_item = jnp.where(u[1, :N_ITEMS] >= PROMPT_DROPOUT, ref_i_lin * scale, 0.0)
    assert jnp.allclose(user_prompt, ref_user, atol=1e-4, rtol=1e-4)
    assert jnp.allclose(item_prompt, ref_item, atol=1e-4, rtol=1e-4)

    # Eval path (no dropout) matches the pure linear layers.
    user_eval, item_eval = model.forward(k_drop, training=False)
    jax.block_until_ready((user_eval, item_eval))
    assert jnp.allclose(user_eval, ref_u_lin, atol=1e-4, rtol=1e-4)
    assert jnp.allclose(item_eval, ref_i_lin, atol=1e-4, rtol=1e-4)

    print("KERNEL_OK")
</pallas_src>

<mosaic_0001>
module attributes {stable_mosaic.version = 11 : i64} {
  func.func @_prompt_kernel(%arg0: i32, %arg1: memref<1x64x128xf32, #tpu.memory_space<vmem>>, %arg2: memref<1x128x128xf32, #tpu.memory_space<vmem>>, %arg3: memref<1x1x128xf32, #tpu.memory_space<vmem>>, %arg4: memref<1x64x128xf32, #tpu.memory_space<vmem>>, %arg5: memref<1x64x128xf32, #tpu.memory_space<vmem>>) attributes {dimension_semantics = [#tpu.dimension_semantics<parallel>], iteration_bounds = array<i64: 2>, scalar_prefetch = 0 : i64, scratch_operands = 0 : i64, tpu.core_type = #tpu.core_type<tc>, window_params = [{transform_indices = @transform_0, window_bounds = array<i64: 1, 64, 128>}, {transform_indices = @transform_1, window_bounds = array<i64: 1, 128, 128>}, {transform_indices = @transform_2, window_bounds = array<i64: 1, 1, 128>}, {transform_indices = @transform_3, window_bounds = array<i64: 1, 64, 128>}, {transform_indices = @transform_4, window_bounds = array<i64: 1, 64, 128>}]} {
    %c0 = arith.constant 0 : index
    %c0_0 = arith.constant 0 : index
    %c0_1 = arith.constant 0 : index
    %0 = vector.load %arg1[%c0, %c0_0, %c0_1] : memref<1x64x128xf32, #tpu.memory_space<vmem>>, vector<1x64x128xf32>
    %1 = vector.shape_cast %0 : vector<1x64x128xf32> to vector<64x128xf32>
    %c0_2 = arith.constant 0 : index
    %c0_3 = arith.constant 0 : index
    %c0_4 = arith.constant 0 : index
    %2 = vector.load %arg2[%c0_2, %c0_3, %c0_4] : memref<1x128x128xf32, #tpu.memory_space<vmem>>, vector<1x128x128xf32>
    %3 = vector.shape_cast %2 : vector<1x128x128xf32> to vector<128x128xf32>
    %cst = arith.constant dense<0.000000e+00> : vector<64x128xf32>
    %4 = tpu.matmul %1, %3, %cst {dimension_numbers = #tpu.dot_dimension_numbers<[1], [0], [0], [1], [0, 0, 1, 1], [], []>} : vector<64x128xf32>, vector<128x128xf32>, vector<64x128xf32> -> vector<64x128xf32>
    %c0_5 = arith.constant 0 : index
    %c0_6 = arith.constant 0 : index
    %c0_7 = arith.constant 0 : index
    %5 = vector.load %arg3[%c0_5, %c0_6, %c0_7] : memref<1x1x128xf32, #tpu.memory_space<vmem>>, vector<1x1x128xf32>
    %6 = vector.shape_cast %5 : vector<1x1x128xf32> to vector<1x128xf32>
    %7 = vector.broadcast %6 : vector<1x128xf32> to vector<64x128xf32>
    %8 = arith.addf %4, %7 : vector<64x128xf32>
    %c0_8 = arith.constant 0 : index
    %c0_9 = arith.constant 0 : index
    %c0_10 = arith.constant 0 : index
    %9 = vector.load %arg4[%c0_8, %c0_9, %c0_10] : memref<1x64x128xf32, #tpu.memory_space<vmem>>, vector<1x64x128xf32>
    %10 = vector.shape_cast %9 : vector<1x64x128xf32> to vector<64x128xf32>
    %cst_11 = arith.constant 3.000000e-01 : f32
    %11 = vector.broadcast %cst_11 : f32 to vector<64x128xf32>
    %12 = arith.cmpf oge, %10, %11 : vector<64x128xf32>
    %cst_12 = arith.constant 1.42857146 : f32
    %13 = vector.broadcast %cst_12 : f32 to vector<64x128xf32>
    %14 = arith.mulf %8, %13 : vector<64x128xf32>
    %cst_13 = arith.constant 0.000000e+00 : f32
    %15 = vector.broadcast %cst_13 : f32 to vector<64x128xf32>
    %16 = arith.select %12, %14, %15 : vector<64x128xi1>, vector<64x128xf32>
    %c0_14 = arith.constant 0 : index
    %c0_15 = arith.constant 0 : index
    %c0_16 = arith.constant 0 : index
    %17 = vector.load %arg5[%c0_14, %c0_15, %c0_16] : memref<1x64x128xf32, #tpu.memory_space<vmem>>, vector<1x64x128xf32>
    %18 = vector.shape_cast %17 : vector<1x64x128xf32> to vector<64x128xf32>
    %19 = vector.shape_cast %16 : vector<64x128xf32> to vector<1x64x128xf32>
    tpu.vector_store %arg5[%c0_14, %c0_15, %c0_16], %19 {strides = array<i32>} : memref<1x64x128xf32, #tpu.memory_space<vmem>>, vector<1x64x128xf32>,
    return
  }
  func.func @transform_0(%arg0: i32) -> (i32, i32, i32) {
    %c0_i32 = arith.constant 0 : i32
    %c0_i32_0 = arith.constant 0 : i32
    %c0_i32_1 = arith.constant 0 : i32
    return %arg0, %c0_i32, %c0_i32_0 : i32, i32, i32
  }
  func.func @transform_1(%arg0: i32) -> (i32, i32, i32) {
    %c0_i32 = arith.constant 0 : i32
    %c0_i32_0 = arith.constant 0 : i32
    %c0_i32_1 = arith.constant 0 : i32
    return %arg0, %c0_i32, %c0_i32_0 : i32, i32, i32
  }
  func.func @transform_2(%arg0: i32) -> (i32, i32, i32) {
    %c0_i32 = arith.constant 0 : i32
    %c0_i32_0 = arith.constant 0 : i32
    %c0_i32_1 = arith.constant 0 : i32
    return %arg0, %c0_i32, %c0_i32_0 : i32, i32, i32
  }
  func.func @transform_3(%arg0: i32) -> (i32, i32, i32) {
    %c0_i32 = arith.constant 0 : i32
    %c0_i32_0 = arith.constant 0 : i32
    %c0_i32_1 = arith.constant 0 : i32
    return %arg0, %c0_i32, %c0_i32_0 : i32, i32, i32
  }
  func.func @transform_4(%arg0: i32) -> (i32, i32, i32) {
    %c0_i32 = arith.constant 0 : i32
    %c0_i32_0 = arith.constant 0 : i32
    %c0_i32_1 = arith.constant 0 : i32
    return %arg0, %c0_i32, %c0_i32_0 : i32, i32, i32
  }
}

</mosaic_0001>

<llo_original>
// kernel: prompt_forward.1
$region0: #{prompt_forward.1}
  #allocation0 [shape = 'u32[]', space=smem, size = 0x4, offset = 0x4, fixed_abs, tag = 'smem constant byte address 0x4 - core index']
  #allocation1 [shape = 'u32[144,128]{1,0:T(1,128)}', space=vmem, size = 0x12000, scoped, tag = 'internal scratch']
  %s0 = inlined_call_operand.vmem [shape: f32[2,64,128], index: 0, kind: input, shape index: {}]
  %s1 = inlined_call_operand.vmem [shape: f32[2,128,128], index: 1, kind: input, shape index: {}]
  %s2 = inlined_call_operand.vmem [shape: f32[2,1,128], index: 2, kind: input, shape index: {}]
  %s3 = inlined_call_operand.vmem [shape: f32[2,64,128], index: 3, kind: input, shape index: {}]
  %s4 = inlined_call_operand.vmem [shape: f32[2,64,128], index: 4, kind: output, shape index: {}]
  %s5 = sld [smem:[#allocation0]]
  $region49: #{prompt_forward.1} parent=0
    _
  %s7 = ssub.s32 1, %s5
  %s8 = scalar_select 0, %s7, %s5
  loop: start=0, step=1, limit=4
  $region2: #{prompt_forward.1} parent=0 // loop_pre_header
    _
  $region3: #{prompt_forward.1} parent=0 // loop_header
    %s10 = sphi 0, %s14
    %p11 = scmp.ge.s32.totalorder %s10, 4
    %s20 = sphi 0, %s22
    %s23 = sphi 0, %s20
    %s24 = sphi 0, %s23
    %s40 = sphi 0, %s24
    %s46 = sphi 0, %s48
    %s49 = sphi 0, %s46
    %s50 = sphi 0, %s49
    %s66 = sphi 0, %s50
    %s72 = sphi 0, %s74
    %s75 = sphi 0, %s72
    %s76 = sphi 0, %s75
    %s92 = sphi 0, %s76
    %s98 = sphi 0, %s100
    %s101 = sphi 0, %s98
    %s102 = sphi 0, %s101
    %s118 = sphi 0, %s102
    %s124 = sphi 0, %s126
    %s127 = sphi 0, %s124
    %s128 = sphi 0, %s127
    %s144 = sphi 0, %s128
  $region4: #{prompt_forward.1} parent=0 // loop_header_branch
    %13 = sbr.rel (%p11) target = $region8
  $region5: #{prompt_forward.1} parent=0 // loop_body
    %s15 = ssub.s32 %s10, 1
    %s16 = ssub.s32 %s10, 2
    %s17 = sadd.s32 %s10, 1
    %s18 = ssub.s32 %s10, %s17
    %p19 = scmp.eq.s32.totalorder %s18, 0
    %s21 = sadd.s32 %s20, 1
    %s22 = scalar_select %p19, %s20, %s21
    %p25 = pneg %p19
    %p26 = scmp.eq.s32.totalorder %s10, 1
    %p27 = por %p25, %p26
    %p28 = scmp.ne.s32.totalorder %s20, %s23
    %p29 = scmp.eq.s32.totalorder %s10, 0
    %p30 = por %p28, %p29
    %p31 = scmp.ne.s32.totalorder %s20, %s23
    %p32 = scmp.eq.s32.totalorder %s15, 1
    %p33 = por %p31, %p32
    %p34 = scmp.ne.s32.totalorder %s23, %s24
    %p35 = scmp.eq.s32.totalorder %s15, 0
    %p36 = por %p34, %p35
    %p37 = scmp.ne.s32.totalorder %s23, %s24
    %p38 = scmp.eq.s32.totalorder %s16, 1
    %p39 = por %p37, %p38
    %p41 = scmp.ne.s32.totalorder %s24, %s40
    %p42 = scmp.eq.s32.totalorder %s16, 0
    %p43 = por %p41, %p42
    %s44 = ssub.s32 %s10, %s17
    %p45 = scmp.eq.s32.totalorder %s44, 0
    %s47 = sadd.s32 %s46, 1
    %s48 = scalar_select %p45, %s46, %s47
    %p51 = pneg %p45
    %p52 = scmp.eq.s32.totalorder %s10, 1
    %p53 = por %p51, %p52
    %p54 = scmp.ne.s32.totalorder %s46, %s49
    %p55 = scmp.eq.s32.totalorder %s10, 0
    %p56 = por %p54, %p55
    %p57 = scmp.ne.s32.totalorder %s46, %s49
    %p58 = scmp.eq.s32.totalorder %s15, 1
    %p59 = por %p57, %p58
    %p60 = scmp.ne.s32.totalorder %s49, %s50
    %p61 = scmp.eq.s32.totalorder %s15, 0
    %p62 = por %p60, %p61
    %p63 = scmp.ne.s32.totalorder %s49, %s50
    %p64 = scmp.eq.s32.totalorder %s16, 1
    %p65 = por %p63, %p64
    %p67 = scmp.ne.s32.totalorder %s50, %s66
    %p68 = scmp.eq.s32.totalorder %s16, 0
    %p69 = por %p67, %p68
    %s70 = ssub.s32 %s10, %s17
    %p71 = scmp.eq.s32.totalorder %s70, 0
    %s73 = sadd.s32 %s72, 1
    %s74 = scalar_select %p71, %s72, %s73
    %p77 = pneg %p71
    %p78 = scmp.eq.s32.totalorder %s10, 1
    %p79 = por %p77, %p78
    %p80 = scmp.ne.s32.totalorder %s72, %s75
    %p81 = scmp.eq.s32.totalorder %s10, 0
    %p82 = por %p80, %p81
    %p83 = scmp.ne.s32.totalorder %s72, %s75
    %p84 = scmp.eq.s32.totalorder %s15, 1
    %p85 = por %p83, %p84
    %p86 = scmp.ne.s32.totalorder %s75, %s76
    %p87 = scmp.eq.s32.totalorder %s15, 0
    %p88 = por %p86, %p87
    %p89 = scmp.ne.s32.totalorder %s75, %s76
    %p90 = scmp.eq.s32.totalorder %s16, 1
    %p91 = por %p89, %p90
    %p93 = scmp.ne.s32.totalorder %s76, %s92
    %p94 = scmp.eq.s32.totalorder %s16, 0
    %p95 = por %p93, %p94
    %s96 = ssub.s32 %s10, %s17
    %p97 = scmp.eq.s32.totalorder %s96, 0
    %s99 = sadd.s32 %s98, 1
    %s100 = scalar_select %p97, %s98, %s99
    %p103 = pneg %p97
    %p104 = scmp.eq.s32.totalorder %s10, 1
    %p105 = por %p103, %p104
    %p106 = scmp.ne.s32.totalorder %s98, %s101
    %p107 = scmp.eq.s32.totalorder %s10, 0
    %p108 = por %p106, %p107
    %p109 = scmp.ne.s32.totalorder %s98, %s101
    %p110 = scmp.eq.s32.totalorder %s15, 1
    %p111 = por %p109, %p110
    %p112 = scmp.ne.s32.totalorder %s101, %s102
    %p113 = scmp.eq.s32.totalorder %s15, 0
    %p114 = por %p112, %p113
    %p115 = scmp.ne.s32.totalorder %s101, %s102
    %p116 = scmp.eq.s32.totalorder %s16, 1
    %p117 = por %p115, %p116
    %p119 = scmp.ne.s32.totalorder %s102, %s118
    %p120 = scmp.eq.s32.totalorder %s16, 0
    %p121 = por %p119, %p120
    %s122 = ssub.s32 %s10, %s17
    %p123 = scmp.eq.s32.totalorder %s122, 0
    %s125 = sadd.s32 %s124, 1
    %s126 = scalar_select %p123, %s124, %s125
    %p129 = pneg %p123
    %p130 = scmp.eq.s32.totalorder %s10, 1
    %p131 = por %p129, %p130
    %p132 = scmp.ne.s32.totalorder %s124, %s127
    %p133 = scmp.eq.s32.totalorder %s10, 0
    %p134 = por %p132, %p133
    %p135 = scmp.ne.s32.totalorder %s124, %s127
    %p136 = scmp.eq.s32.totalorder %s15, 1
    %p137 = por %p135, %p136
    %p138 = scmp.ne.s32.totalorder %s127, %s128
    %p139 = scmp.eq.s32.totalorder %s15, 0
    %p140 = por %p138, %p139
    %p141 = scmp.ne.s32.totalorder %s127, %s128
    %p142 = scmp.eq.s32.totalorder %s16, 1
    %p143 = por %p141, %p142
    %p145 = scmp.ne.s32.totalorder %s128, %s144
    %p146 = scmp.eq.s32.totalorder %s16, 0
    %p147 = por %p145, %p146
    %p148 = scmp.le.s32.totalorder 1, %s10
    %p149 = scmp.lt.s32.totalorder %s10, 3
    %p150 = pnand %p148, %p149
    %p151 = pneg %p150
    // Predicated region
    $region9: #{prompt_forward.1} parent=5 // pred_check
      _
    $region10: #{prompt_forward.1} parent=5 // pred_check_branch
      %153 = sbr.rel (%p150) target = $region12
    $region11: #{prompt_forward.1} parent=5 // pred_region
      %s154 = ssub.s32 %s10, 1
    $region12: #{prompt_forward.1} parent=5 // pred_fallthru
      _
    %p155 = scmp.lt.s32.totalorder %s10, 2
    // Predicated region
    $region13: #{prompt_forward.1} parent=5 // pred_check
      %p156 = pneg %p155
    $region14: #{prompt_forward.1} parent=5 // pred_check_branch
      %158 = sbr.rel (%p156) target = $region16
    $region15: #{prompt_forward.1} parent=5 // pred_region
      // Predicated region
      $region17: #{prompt_forward.1} parent=15 // pred_check
        %p159 = pneg %p30
      $region18: #{prompt_forward.1} parent=15 // pred_check_branch
        %161 = sbr.rel (%p159) target = $region20
      $region19: #{prompt_forward.1} parent=15 // pred_region
        %p162 = scmp.lt.s32.totalorder %s10, 1
        %s163 = scalar_select %p162, %s10, 1
        %s164 = smul.addr %s163, 8
        %s165 = smul.addr %s164, 8
        %s166 = scalar_lea.vmem %s0, %s165
      $region20: #{prompt_forward.1} parent=15 // pred_fallthru
        _
      // Predicated region
      $region21: #{prompt_forward.1} parent=15 // pred_check
        %p167 = pneg %p56
      $region22: #{prompt_forward.1} parent=15 // pred_check_branch
        %169 = sbr.rel (%p167) target = $region24
      $region23: #{prompt_forward.1} parent=15 // pred_region
        %p170 = scmp.lt.s32.totalorder %s10, 1
        %s171 = scalar_select %p170, %s10, 1
        %s172 = smul.addr %s171, 16
        %s173 = smul.addr %s172, 8
        %s174 = scalar_lea.vmem %s1, %s173
      $region24: #{prompt_forward.1} parent=15 // pred_fallthru
        _
      // Predicated region
      $region25: #{prompt_forward.1} parent=15 // pred_check
        %p175 = pneg %p82
      $region26: #{prompt_forward.1} parent=15 // pred_check_branch
        %177 = sbr.rel (%p175) target = $region28
      $region27: #{prompt_forward.1} parent=15 // pred_region
        %p178 = scmp.lt.s32.totalorder %s10, 1
        %s179 = scalar_select %p178, %s10, 1
        %s180 = scalar_lea.vmem %s2, %s179
      $region28: #{prompt_forward.1} parent=15 // pred_fallthru
        _
      // Predicated region
      $region29: #{prompt_forward.1} parent=15 // pred_check
        %p181 = pneg %p108
      $region30: #{prompt_forward.1} parent=15 // pred_check_branch
        %183 = sbr.rel (%p181) target = $region32
      $region31: #{prompt_forward.1} parent=15 // pred_region
        %p184 = scmp.lt.s32.totalorder %s10, 1
        %s185 = scalar_select %p184, %s10, 1
        %s186 = smul.addr %s185, 8
        %s187 = smul.addr %s186, 8
        %s188 = scalar_lea.vmem %s3, %s187
      $region32: #{prompt_forward.1} parent=15 // pred_fallthru
        _
    $region16: #{prompt_forward.1} parent=5 // pred_fallthru
      _
    %p189 = scmp.le.s32.totalorder 1, %s10
    %p190 = scmp.lt.s32.totalorder %s10, 3
    %p191 = pnand %p189, %p190
    %p192 = pneg %p191
    // Predicated region
    $region33: #{prompt_forward.1} parent=5 // pred_check
      _
    $region34: #{prompt_forward.1} parent=5 // pred_check_branch
      %194 = sbr.rel (%p191) target = $region36
    $region35: #{prompt_forward.1} parent=5 // pred_region
      %s195 = ssub.s32 %s10, 1
      %p196 = scmp.lt.s32.totalorder %s15, 1
      %s197 = scalar_select %p196, %s15, 1
      %s198 = smul.addr %s197, 8
      %s199 = smul.addr %s198, 8
      %s200 = scalar_lea.vmem %s0, %s199
      %p201 = pneg %p36
      %p202 = pneg %p33
      %p203 = scmp.lt.s32.totalorder %s15, 1
      %s204 = scalar_select %p203, %s15, 1
      %s205 = smul.addr %s204, 16
      %s206 = smul.addr %s205, 8
      %s207 = scalar_lea.vmem %s1, %s206
      %p208 = pneg %p62
      %p209 = pneg %p59
      %p210 = scmp.lt.s32.totalorder %s15, 1
      %s211 = scalar_select %p210, %s15, 1
      %s212 = scalar_lea.vmem %s2, %s211
      %p213 = pneg %p88
      %p214 = pneg %p85
      %p215 = scmp.lt.s32.totalorder %s15, 1
      %s216 = scalar_select %p215, %s15, 1
      %s217 = smul.addr %s216, 8
      %s218 = smul.addr %s217, 8
      %s219 = scalar_lea.vmem %s3, %s218
      %p220 = pneg %p114
      %p221 = pneg %p111
      %p222 = pneg %p140
      %p223 = pneg %p137
      %p224 = scmp.lt.s32.totalorder %s15, 1
      %s225 = scalar_select %p224, %s15, 1
      %s226 = smul.addr %s225, 8
      %s227 = smul.addr %s226, 8
      %s228 = scalar_lea.vmem %s4, %s227
      %p229 = scmp.lt.s32.totalorder %s15, 1
      %s230 = scalar_select %p229, %s15, 1
      %s231 = smul.addr %s230, 8
      %s232 = smul.addr %s231, 8
      %s233 = scalar_lea.vmem %s0, %s232
      %p234 = scmp.lt.s32.totalorder %s15, 1
      %s235 = scalar_select %p234, %s15, 1
      %s236 = smul.addr %s235, 16
      %s237 = smul.addr %s236, 8
      %s238 = scalar_lea.vmem %s1, %s237
      %p239 = scmp.lt.s32.totalorder %s15, 1
      %s240 = scalar_select %p239, %s15, 1
      %s241 = scalar_lea.vmem %s2, %s240
      %p242 = scmp.lt.s32.totalorder %s15, 1
      %s243 = scalar_select %p242, %s15, 1
      %s244 = smul.addr %s243, 8
      %s245 = smul.addr %s244, 8
      %s246 = scalar_lea.vmem %s3, %s245
      %p247 = scmp.lt.s32.totalorder %s15, 1
      %s248 = scalar_select %p247, %s15, 1
      %s249 = smul.addr %s248, 8
      %s250 = smul.addr %s249, 8
      %s251 = scalar_lea.vmem %s4, %s250
      %v252 = vld [vmem:[%s233] sm:$0xff]
      %v253 = vld [vmem:[%s233 + $0x8] sm:$0xff]
      %v254 = vld [vmem:[%s233 + $0x10] sm:$0xff]
      %v255 = vld [vmem:[%s233 + $0x18] sm:$0xff]
      %v256 = vld [vmem:[%s233 + $0x20] sm:$0xff]
      %v257 = vld [vmem:[%s233 + $0x28] sm:$0xff]
      %v258 = vld [vmem:[%s233 + $0x30] sm:$0xff]
      %v259 = vld [vmem:[%s233 + $0x38] sm:$0xff]
      %v260 = vld [vmem:[%s238] sm:$0xff]
      %v261 = vld [vmem:[%s238 + $0x8] sm:$0xff]
      %v262 = vld [vmem:[%s238 + $0x10] sm:$0xff]
      %v263 = vld [vmem:[%s238 + $0x18] sm:$0xff]
      %v264 = vld [vmem:[%s238 + $0x20] sm:$0xff]
      %v265 = vld [vmem:[%s238 + $0x28] sm:$0xff]
      %v266 = vld [vmem:[%s238 + $0x30] sm:$0xff]
      %v267 = vld [vmem:[%s238 + $0x38] sm:$0xff]
      %v268 = vld [vmem:[%s238 + $0x40] sm:$0xff]
      %v269 = vld [vmem:[%s238 + $0x48] sm:$0xff]
      %v270 = vld [vmem:[%s238 + $0x50] sm:$0xff]
      %v271 = vld [vmem:[%s238 + $0x58] sm:$0xff]
      %v272 = vld [vmem:[%s238 + $0x60] sm:$0xff]
      %v273 = vld [vmem:[%s238 + $0x68] sm:$0xff]
      %v274 = vld [vmem:[%s238 + $0x70] sm:$0xff]
      %v275 = vld [vmem:[%s238 + $0x78] sm:$0xff]
      %v276 = vld [vmem:[%s241] sm:$0x1]
      %v278 = vlaneseq
      %v279 = vshrl.u32 %v278, 7
      %v280 = vsub.s32 0, %v279
      %v281 = vrot.slane %v276, %v280
      %283 = vmatprep.subr.mxu0 0.0
      %284 = vmatpush1.msra.mxu0 %v260
      %285 = vmatprep.subr.mxu0 0.0
      %286 = vmatpush1.msra.mxu0 %v261
      %287 = vmatprep.subr.mxu0 0.0
      %288 = vmatpush1.msra.mxu0 %v262
      %289 = vmatprep.subr.mxu0 0.0
      %290 = vmatpush1.msra.mxu0 %v263
      %291 = vmatprep.subr.mxu0 0.0
      %292 = vmatpush1.msra.mxu0 %v264
      %293 = vmatprep.subr.mxu0 0.0
      %294 = vmatpush1.msra.mxu0 %v265
      %295 = vmatprep.subr.mxu0 0.0
      %296 = vmatpush1.msra.mxu0 %v266
      %297 = vmatprep.subr.mxu0 0.0
      %298 = vmatpush1.msra.mxu0 %v267
      %299 = vmatprep.subr.mxu0 0.0
      %300 = vmatpush1.msra.mxu0 %v268
      %301 = vmatprep.subr.mxu0 0.0
      %302 = vmatpush1.msra.mxu0 %v269
      %303 = vmatprep.subr.mxu0 0.0
      %304 = vmatpush1.msra.mxu0 %v270
      %305 = vmatprep.subr.mxu0 0.0
      %306 = vmatpush1.msra.mxu0 %v271
      %307 = vmatprep.subr.mxu0 0.0
      %308 = vmatpush1.msra.mxu0 %v272
      %309 = vmatprep.subr.mxu0 0.0
      %310 = vmatpush1.msra.mxu0 %v273
      %311 = vmatprep.subr.mxu0 0.0
      %312 = vmatpush1.msra.mxu0 %v274
      %313 = vmatprep.subr.mxu0 0.0
      %314 = vmatpush1.msra.mxu0 %v275
      %315 = vmatprep.subr.mxu0 0.0
      %316 = vmatpush1.msra.mxu0 0.0
      %317 = vmatprep.subr.mxu0 0.0
      %318 = vmatpush1.msra.mxu0 0.0
      %319 = vmatprep.subr.mxu0 0.0
      %320 = vmatpush1.msra.mxu0 0.0
      %321 = vmatprep.subr.mxu0 0.0
      %322 = vmatpush1.msra.mxu0 0.0
      %323 = vmatprep.subr.mxu0 0.0
      %324 = vmatpush1.msra.mxu0 0.0
      %325 = vmatprep.subr.mxu0 0.0
      %326 = vmatpush1.msra.mxu0 0.0
      %327 = vmatprep.subr.mxu0 0.0
      %328 = vmatpush1.msra.mxu0 0.0
      %329 = vmatprep.subr.mxu0 0.0
      %330 = vmatpush1.msra.mxu0 0.0
      %331 = vmatprep.subr.mxu0 0.0
      %332 = vmatpush1.msra.mxu0 0.0
      %333 = vmatprep.subr.mxu0 0.0
      %334 = vmatpush1.msra.mxu0 0.0
      %335 = vmatprep.subr.mxu0 0.0
      %336 = vmatpush1.msra.mxu0 0.0
      %337 = vmatprep.subr.mxu0 0.0
      %338 = vmatpush1.msra.mxu0 0.0
      %339 = vmatprep.subr.mxu0 0.0
      %340 = vmatpush1.msra.mxu0 0.0
      %341 = vmatprep.subr.mxu0 0.0
      %342 = vmatpush1.msra.mxu0 0.0
      %343 = vmatprep.subr.mxu0 0.0
      %344 = vmatpush1.msra.mxu0 0.0
      %345 = vmatprep.subr.mxu0 0.0
      %346 = vmatpush1.msra.mxu0 0.0
      %347 = vmatprep.mubr.f32.mxu0 0.0
      %348 = vmatmul.mubr.f32.gmra.mrb[0].mxu0 %v252
      %v349 = vpop.f32.mrb[0].mxu0
      %v350 = vadd.f32 %v281, %v349
      %v351 = vpop.f32.mrb[0].mxu0
      %352 = vmatprep.mubr.f32.mxu0 0.0
      %353 = vmatmul.mubr.f32.gmra.mrb[0].mxu0 %v253
      %v354 = vpop.f32.mrb[0].mxu0
      %v355 = vadd.f32 %v281, %v354
      %v356 = vpop.f32.mrb[0].mxu0
      %357 = vmatprep.mubr.f32.mxu0 0.0
      %358 = vmatmul.mubr.f32.gmra.mrb[0].mxu0 %v254
      %v359 = vpop.f32.mrb[0].mxu0
      %v360 = vadd.f32 %v281, %v359
      %v361 = vpop.f32.mrb[0].mxu0
      %362 = vmatprep.mubr.f32.mxu0 0.0
      %363 = vmatmul.mubr.f32.gmra.mrb[0].mxu0 %v255
      %v364 = vpop.f32.mrb[0].mxu0
      %v365 = vadd.f32 %v281, %v364
      %v366 = vpop.f32.mrb[0].mxu0
      %367 = vmatprep.mubr.f32.mxu0 0.0
      %368 = vmatmul.mubr.f32.gmra.mrb[0].mxu0 %v256
      %v369 = vpop.f32.mrb[0].mxu0
      %v370 = vadd.f32 %v281, %v369
      %v371 = vpop.f32.mrb[0].mxu0
      %372 = vmatprep.mubr.f32.mxu0 0.0
      %373 = vmatmul.mubr.f32.gmra.mrb[0].mxu0 %v257
      %v374 = vpop.f32.mrb[0].mxu0
      %v375 = vadd.f32 %v281, %v374
      %v376 = vpop.f32.mrb[0].mxu0
      %377 = vmatprep.mubr.f32.mxu0 0.0
      %378 = vmatmul.mubr.f32.gmra.mrb[0].mxu0 %v258
      %v379 = vpop.f32.mrb[0].mxu0
      %v380 = vadd.f32 %v281, %v379
      %v381 = vpop.f32.mrb[0].mxu0
      %382 = vmatprep.mubr.f32.mxu0 0.0
      %383 = vmatmul.mubr.f32.gmra.mrb[0].mxu0 %v259
      %v384 = vpop.f32.mrb[0].mxu0
      %v385 = vadd.f32 %v281, %v384
      %v386 = vpop.f32.mrb[0].mxu0
      %387 = vdwg.mxu0
      %v388 = vld [vmem:[%s246] sm:$0xff]
      %v389 = vld [vmem:[%s246 + $0x8] sm:$0xff]
      %v390 = vld [vmem:[%s246 + $0x10] sm:$0xff]
      %v391 = vld [vmem:[%s246 + $0x18] sm:$0xff]
      %v392 = vld [vmem:[%s246 + $0x20] sm:$0xff]
      %v393 = vld [vmem:[%s246 + $0x28] sm:$0xff]
      %v394 = vld [vmem:[%s246 + $0x30] sm:$0xff]
      %v395 = vld [vmem:[%s246 + $0x38] sm:$0xff]
      %vm396 = vcmp.ge.f32.partialorder %v388, 0.3
      %vm397 = vcmp.ge.f32.partialorder %v389, 0.3
      %vm398 = vcmp.ge.f32.partialorder %v390, 0.3
      %vm399 = vcmp.ge.f32.partialorder %v391, 0.3
      %vm400 = vcmp.ge.f32.partialorder %v392, 0.3
      %vm401 = vcmp.ge.f32.partialorder %v393, 0.3
      %vm402 = vcmp.ge.f32.partialorder %v394, 0.3
      %vm403 = vcmp.ge.f32.partialorder %v395, 0.3
      %v404 = vmul.f32 %v350, 1.4285715
      %v405 = vmul.f32 %v355, 1.4285715
      %v406 = vmul.f32 %v360, 1.4285715
      %v407 = vmul.f32 %v365, 1.4285715
      %v408 = vmul.f32 %v370, 1.4285715
      %v409 = vmul.f32 %v375, 1.4285715
      %v410 = vmul.f32 %v380, 1.4285715
      %v411 = vmul.f32 %v385, 1.4285715
      %v412 = vsel %vm396, %v404, 0.0
      %v413 = vsel %vm397, %v405, 0.0
      %v414 = vsel %vm398, %v406, 0.0
      %v415 = vsel %vm399, %v407, 0.0
      %v416 = vsel %vm400, %v408, 0.0
      %v417 = vsel %vm401, %v409, 0.0
      %v418 = vsel %vm402, %v410, 0.0
      %v419 = vsel %vm403, %v411, 0.0
      %420 = vst [vmem:[%s251] sm:$0xff] %v412
      %421 = vst [vmem:[%s251 + $0x8] sm:$0xff] %v413
      %422 = vst [vmem:[%s251 + $0x10] sm:$0xff] %v414
      %423 = vst [vmem:[%s251 + $0x18] sm:$0xff] %v415
      %424 = vst [vmem:[%s251 + $0x20] sm:$0xff] %v416
      %425 = vst [vmem:[%s251 + $0x28] sm:$0xff] %v417
      %426 = vst [vmem:[%s251 + $0x30] sm:$0xff] %v418
      %427 = vst [vmem:[%s251 + $0x38] sm:$0xff] %v419
      %p428 = scmp.lt.s32.totalorder %s15, 1
      %s429 = scalar_select %p428, %s15, 1
      %s430 = smul.addr %s429, 8
      %s431 = smul.addr %s430, 8
      %s432 = scalar_lea.vmem %s4, %s431
      // Predicated region
      $region37: #{prompt_forward.1} parent=35 // pred_check
        %p433 = pneg %p137
      $region38: #{prompt_forward.1} parent=35 // pred_check_branch
        %435 = sbr.rel (%p433) target = $region40
      $region39: #{prompt_forward.1} parent=35 // pred_region
        _
      $region40: #{prompt_forward.1} parent=35 // pred_fallthru
        _
    $region36: #{prompt_forward.1} parent=5 // pred_fallthru
      _
    %p436 = scmp.le.s32.totalorder 2, %s10
    // Predicated region
    $region41: #{prompt_forward.1} parent=5 // pred_check
      %p437 = pneg %p436
    $region42: #{prompt_forward.1} parent=5 // pred_check_branch
      %439 = sbr.rel (%p437) target = $region44
    $region43: #{prompt_forward.1} parent=5 // pred_region
      %s440 = ssub.s32 %s10, 2
      // Predicated region
      $region45: #{prompt_forward.1} parent=43 // pred_check
        %p441 = pneg %p143
      $region46: #{prompt_forward.1} parent=43 // pred_check_branch
        %443 = sbr.rel (%p441) target = $region48
      $region47: #{prompt_forward.1} parent=43 // pred_region
        %p444 = scmp.lt.s32.totalorder %s16, 1
        %s445 = scalar_select %p444, %s16, 1
        %s446 = smul.addr %s445, 8
        %s447 = smul.addr %s446, 8
        %s448 = scalar_lea.vmem %s4, %s447
      $region48: #{prompt_forward.1} parent=43 // pred_fallthru
        _
    $region44: #{prompt_forward.1} parent=5 // pred_fallthru
      _
  $region6: #{prompt_forward.1} parent=0 // loop_footer
    %s14 = sadd.s32 1, %s10
  $region7: #{prompt_forward.1} parent=0 // loop_footer_branch
    %9 = sbr.rel target = $region3
  $region8: #{prompt_forward.1} parent=0 // loop_exit
    _

</llo_original>
